<compile_context>
chip_gen: v6e
topology: v6e:2x2x1
jax: 0.10.0
libtpu: 0.0.40
codegen_flags: <defaults>
</compile_context>

<pallas_src>
import jax
import jax.numpy as jnp
from jax.experimental import pallas as pl
from jax.experimental.pallas import tpu as pltpu
import numpy as np


def _make_decoder_kernel(alpha: float, lt: int, j: int):
    """Build the fully-unrolled CTRNN2 kernel (alpha, lt, J are compile-time constants)."""

    def kernel(w_ref, wt_ref, b_row_ref, b_col_ref, mu_ref):
        # w_ref    : (J, J)    W   (nn.Linear weight, [out_features, in_features])
        # wt_ref   : (J, J)    W^T (precomputed in the wrapper)
        # b_row_ref: (1, J)    bias, lane layout
        # b_col_ref: (J, 1)    bias, sublane layout
        # mu_ref   : (1, lt*J) lane-dense flattened hidden-state trajectory (== mu)
        w = w_ref[...]
        wt = wt_ref[...]
        b_row = b_row_ref[...]
        b_col = b_col_ref[...]

        # ---- step 0 (peeled): hidden == 0  =>  pre-activation == b ----
        h_row = jnp.tanh(b_row)            # (1, J)
        h_col = jnp.tanh(b_col)            # (J, 1)
        if alpha != 1.0:
            h_row = alpha * h_row          # 0*(1-alpha) + alpha*tanh(b)
            h_col = alpha * h_col
        mu_ref[:, 0:j] = h_row

        # ---- steps 1 .. lt-1, fully unrolled (static trip count) ----
        for i in range(1, lt):
            # Row form:    pre_row[c] = sum_r W[c, r] * h[r] + b[c]   (sublane reduce over W^T)
            pre_row = (
                jnp.sum(wt * jnp.broadcast_to(h_col, (j, j)), axis=0, keepdims=True)
                + b_row
            )
            # Column form: pre_col[r] = sum_c W[r, c] * h[c] + b[r]   (lane reduce over W)
            pre_col = (
                jnp.sum(w * jnp.broadcast_to(h_row, (j, j)), axis=1, keepdims=True)
                + b_col
            )
            act_row = jnp.tanh(pre_row)    # EUP; same vector in two layouts
            act_col = jnp.tanh(pre_col)
            if alpha == 1.0:               # dt=None default: hidden <- h_new directly
                h_row, h_col = act_row, act_col
            else:                          # leaky blend, 2 ops on the chain
                h_row = h_row + alpha * (act_row - h_row)
                h_col = h_col + alpha * (act_col - h_col)
            # static lane-offset store into the lane-dense output row (off the chain)
            mu_ref[:, i * j:(i + 1) * j] = h_row

    return kernel


def decoder_forward(x, w, b, *, D_out, dt=None):
    """JAX/Pallas equivalent of Decoder.forward.

    Returns (mu, scale): the parameters of the Normal distribution the PyTorch module
    constructs.  NOTE: mu depends only on (w, b, dt) -- never on x -- so in a real model
    this should be computed once and cached/broadcast rather than re-launched per example.
    """
    del x  # CTRNN2.forward never reads the input values (only device/dtype)
    J = w.shape[0]
    lt = D_out // J
    tau = 1.0
    alpha = 1.0 if dt is None else float(dt) / tau

    # One-time parameter-side layout prep (hoistable/cacheable alongside the parameters):
    # pass both W and W^T plus the bias in row and column layouts -> zero in-kernel relayouts.
    wt = w.T
    b_row = jnp.reshape(b, (1, J))
    b_col = jnp.reshape(b, (J, 1))

    mu_row = pl.pallas_call(
        _make_decoder_kernel(alpha, lt, J),
        out_shape=jax.ShapeDtypeStruct((1, lt * J), jnp.float32),
        in_specs=[
            pl.BlockSpec(memory_space=pltpu.MemorySpace.VMEM),  # W     (J, J)
            pl.BlockSpec(memory_space=pltpu.MemorySpace.VMEM),  # W^T   (J, J)
            pl.BlockSpec(memory_space=pltpu.MemorySpace.VMEM),  # b row (1, J)
            pl.BlockSpec(memory_space=pltpu.MemorySpace.VMEM),  # b col (J, 1)
        ],
        out_specs=pl.BlockSpec(memory_space=pltpu.MemorySpace.VMEM),
    )(w, wt, b_row, b_col)

    mu = mu_row.reshape(-1)                   # contiguous -> metadata-only reshape
    # TODO(synk): torch.distributions.Normal has no Pallas/JAX-array equivalent; we return
    # its parameters. scale is a compile-time constant (ones) => zero runtime ops.
    scale = jnp.ones((lt * J,), jnp.float32)
    return mu, scale


def _reference_forward(w, b, lt, alpha):
    """Pure-JAX reference for correctness checking."""
    h = jnp.zeros((w.shape[0],), jnp.float32)
    outs = []
    for _ in range(lt):
        h_new = jnp.tanh(w @ h + b.reshape(-1))
        h = h * (1.0 - alpha) + h_new * alpha
        outs.append(h)
    return jnp.stack(outs, axis=0).reshape(-1)


if __name__ == "__main__":
    # Shapes consistent with the module:
    #   latent_size = 16  -> J_dim = int(sqrt(16)) = 4
    #   D_out       = 32  -> lt = D_out // J_dim = 8 recurrent steps
    latent_size = 16
    D_out = 32
    J_dim = int(np.sqrt(latent_size))

    key = jax.random.PRNGKey(0)
    k_x, k_w, k_b = jax.random.split(key, 3)

    # Decoder input (its values are unused by the forward pass, matching PyTorch)
    x = jax.random.normal(k_x, (latent_size,), dtype=jnp.float32)

    # nn.Linear(J_dim, J_dim) default init: U(-k, k), k = 1/sqrt(in_features)
    bound = 1.0 / np.sqrt(J_dim)
    w = jax.random.uniform(k_w, (J_dim, J_dim), jnp.float32, -bound, bound)
    b = jax.random.uniform(k_b, (1, J_dim), jnp.float32, -bound, bound)

    # Exercise both the default (dt=None -> alpha=1, blend elided) and leaky (dt=0.1) paths.
    for dt in (None, 0.1):
        mu, scale = decoder_forward(x, w, b, D_out=D_out, dt=dt)
        mu = jax.block_until_ready(mu)
        scale = jax.block_until_ready(scale)

        alpha = 1.0 if dt is None else dt / 1.0
        mu_ref = _reference_forward(w, b, D_out // J_dim, alpha)
        assert mu.shape == (D_out,)
        assert scale.shape == (D_out,)
        np.testing.assert_allclose(np.asarray(mu), np.asarray(mu_ref), rtol=1e-5, atol=1e-5)

    print("KERNEL_OK")
</pallas_src>

<mosaic_0001>
module attributes {stable_mosaic.version = 11 : i64} {
  func.func @kernel(%arg0: memref<4x4xf32, #tpu.memory_space<vmem>>, %arg1: memref<4x4xf32, #tpu.memory_space<vmem>>, %arg2: memref<1x4xf32, #tpu.memory_space<vmem>>, %arg3: memref<4x1xf32, #tpu.memory_space<vmem>>, %arg4: memref<1x32xf32, #tpu.memory_space<vmem>>) attributes {dimension_semantics = [], scalar_prefetch = 0 : i64, scratch_operands = 0 : i64, tpu.core_type = #tpu.core_type<tc>} {
    %c0 = arith.constant 0 : index
    %c0_0 = arith.constant 0 : index
    %0 = vector.load %arg0[%c0, %c0_0] : memref<4x4xf32, #tpu.memory_space<vmem>>, vector<4x4xf32>
    %c0_1 = arith.constant 0 : index
    %c0_2 = arith.constant 0 : index
    %1 = vector.load %arg1[%c0_1, %c0_2] : memref<4x4xf32, #tpu.memory_space<vmem>>, vector<4x4xf32>
    %c0_3 = arith.constant 0 : index
    %c0_4 = arith.constant 0 : index
    %2 = vector.load %arg2[%c0_3, %c0_4] : memref<1x4xf32, #tpu.memory_space<vmem>>, vector<1x4xf32>
    %c0_5 = arith.constant 0 : index
    %c0_6 = arith.constant 0 : index
    %3 = vector.load %arg3[%c0_5, %c0_6] : memref<4x1xf32, #tpu.memory_space<vmem>>, vector<4x1xf32>
    %4 = math.tanh %2 : vector<1x4xf32>
    %5 = math.tanh %3 : vector<4x1xf32>
    %c0_7 = arith.constant 0 : index
    %c0_8 = arith.constant 0 : index
    %6 = vector.load %arg4[%c0_7, %c0_8] : memref<1x32xf32, #tpu.memory_space<vmem>>, vector<1x4xf32>
    tpu.vector_store %arg4[%c0_7, %c0_8], %4 {strides = array<i32>} : memref<1x32xf32, #tpu.memory_space<vmem>>, vector<1x4xf32>,
    %7 = vector.shape_cast %5 : vector<4x1xf32> to vector<4x1xf32>
    %8 = vector.broadcast %7 : vector<4x1xf32> to vector<4x4xf32>
    %9 = arith.mulf %1, %8 : vector<4x4xf32>
    %cst = arith.constant dense<0.000000e+00> : vector<4xf32>
    %10 = vector.multi_reduction <add>, %9, %cst [0] : vector<4x4xf32> to vector<4xf32>
    %11 = vector.shape_cast %10 : vector<4xf32> to vector<1x4xf32>
    %12 = arith.addf %11, %2 : vector<1x4xf32>
    %13 = vector.shape_cast %4 : vector<1x4xf32> to vector<1x4xf32>
    %14 = vector.broadcast %13 : vector<1x4xf32> to vector<4x4xf32>
    %15 = arith.mulf %0, %14 : vector<4x4xf32>
    %cst_9 = arith.constant dense<0.000000e+00> : vector<4xf32>
    %16 = vector.multi_reduction <add>, %15, %cst_9 [1] : vector<4x4xf32> to vector<4xf32>
    %17 = vector.shape_cast %16 : vector<4xf32> to vector<4x1xf32>
    %18 = arith.addf %17, %3 : vector<4x1xf32>
    %19 = math.tanh %12 : vector<1x4xf32>
    %20 = math.tanh %18 : vector<4x1xf32>
    %c0_10 = arith.constant 0 : index
    %c4 = arith.constant 4 : index
    %21 = vector.load %arg4[%c0_10, %c4] : memref<1x32xf32, #tpu.memory_space<vmem>>, vector<1x4xf32>
    tpu.vector_store %arg4[%c0_10, %c4], %19 {strides = array<i32>} : memref<1x32xf32, #tpu.memory_space<vmem>>, vector<1x4xf32>,
    %22 = vector.shape_cast %20 : vector<4x1xf32> to vector<4x1xf32>
    %23 = vector.broadcast %22 : vector<4x1xf32> to vector<4x4xf32>
    %24 = arith.mulf %1, %23 : vector<4x4xf32>
    %cst_11 = arith.constant dense<0.000000e+00> : vector<4xf32>
    %25 = vector.multi_reduction <add>, %24, %cst_11 [0] : vector<4x4xf32> to vector<4xf32>
    %26 = vector.shape_cast %25 : vector<4xf32> to vector<1x4xf32>
    %27 = arith.addf %26, %2 : vector<1x4xf32>
    %28 = vector.shape_cast %19 : vector<1x4xf32> to vector<1x4xf32>
    %29 = vector.broadcast %28 : vector<1x4xf32> to vector<4x4xf32>
    %30 = arith.mulf %0, %29 : vector<4x4xf32>
    %cst_12 = arith.constant dense<0.000000e+00> : vector<4xf32>
    %31 = vector.multi_reduction <add>, %30, %cst_12 [1] : vector<4x4xf32> to vector<4xf32>
    %32 = vector.shape_cast %31 : vector<4xf32> to vector<4x1xf32>
    %33 = arith.addf %32, %3 : vector<4x1xf32>
    %34 = math.tanh %27 : vector<1x4xf32>
    %35 = math.tanh %33 : vector<4x1xf32>
    %c0_13 = arith.constant 0 : index
    %c8 = arith.constant 8 : index
    %36 = vector.load %arg4[%c0_13, %c8] : memref<1x32xf32, #tpu.memory_space<vmem>>, vector<1x4xf32>
    tpu.vector_store %arg4[%c0_13, %c8], %34 {strides = array<i32>} : memref<1x32xf32, #tpu.memory_space<vmem>>, vector<1x4xf32>,
    %37 = vector.shape_cast %35 : vector<4x1xf32> to vector<4x1xf32>
    %38 = vector.broadcast %37 : vector<4x1xf32> to vector<4x4xf32>
    %39 = arith.mulf %1, %38 : vector<4x4xf32>
    %cst_14 = arith.constant dense<0.000000e+00> : vector<4xf32>
    %40 = vector.multi_reduction <add>, %39, %cst_14 [0] : vector<4x4xf32> to vector<4xf32>
    %41 = vector.shape_cast %40 : vector<4xf32> to vector<1x4xf32>
    %42 = arith.addf %41, %2 : vector<1x4xf32>
    %43 = vector.shape_cast %34 : vector<1x4xf32> to vector<1x4xf32>
    %44 = vector.broadcast %43 : vector<1x4xf32> to vector<4x4xf32>
    %45 = arith.mulf %0, %44 : vector<4x4xf32>
    %cst_15 = arith.constant dense<0.000000e+00> : vector<4xf32>
    %46 = vector.multi_reduction <add>, %45, %cst_15 [1] : vector<4x4xf32> to vector<4xf32>
    %47 = vector.shape_cast %46 : vector<4xf32> to vector<4x1xf32>
    %48 = arith.addf %47, %3 : vector<4x1xf32>
    %49 = math.tanh %42 : vector<1x4xf32>
    %50 = math.tanh %48 : vector<4x1xf32>
    %c0_16 = arith.constant 0 : index
    %c12 = arith.constant 12 : index
    %51 = vector.load %arg4[%c0_16, %c12] : memref<1x32xf32, #tpu.memory_space<vmem>>, vector<1x4xf32>
    tpu.vector_store %arg4[%c0_16, %c12], %49 {strides = array<i32>} : memref<1x32xf32, #tpu.memory_space<vmem>>, vector<1x4xf32>,
    %52 = vector.shape_cast %50 : vector<4x1xf32> to vector<4x1xf32>
    %53 = vector.broadcast %52 : vector<4x1xf32> to vector<4x4xf32>
    %54 = arith.mulf %1, %53 : vector<4x4xf32>
    %cst_17 = arith.constant dense<0.000000e+00> : vector<4xf32>
    %55 = vector.multi_reduction <add>, %54, %cst_17 [0] : vector<4x4xf32> to vector<4xf32>
    %56 = vector.shape_cast %55 : vector<4xf32> to vector<1x4xf32>
    %57 = arith.addf %56, %2 : vector<1x4xf32>
    %58 = vector.shape_cast %49 : vector<1x4xf32> to vector<1x4xf32>
    %59 = vector.broadcast %58 : vector<1x4xf32> to vector<4x4xf32>
    %60 = arith.mulf %0, %59 : vector<4x4xf32>
    %cst_18 = arith.constant dense<0.000000e+00> : vector<4xf32>
    %61 = vector.multi_reduction <add>, %60, %cst_18 [1] : vector<4x4xf32> to vector<4xf32>
    %62 = vector.shape_cast %61 : vector<4xf32> to vector<4x1xf32>
    %63 = arith.addf %62, %3 : vector<4x1xf32>
    %64 = math.tanh %57 : vector<1x4xf32>
    %65 = math.tanh %63 : vector<4x1xf32>
    %c0_19 = arith.constant 0 : index
    %c16 = arith.constant 16 : index
    %66 = vector.load %arg4[%c0_19, %c16] : memref<1x32xf32, #tpu.memory_space<vmem>>, vector<1x4xf32>
    tpu.vector_store %arg4[%c0_19, %c16], %64 {strides = array<i32>} : memref<1x32xf32, #tpu.memory_space<vmem>>, vector<1x4xf32>,
    %67 = vector.shape_cast %65 : vector<4x1xf32> to vector<4x1xf32>
    %68 = vector.broadcast %67 : vector<4x1xf32> to vector<4x4xf32>
    %69 = arith.mulf %1, %68 : vector<4x4xf32>
    %cst_20 = arith.constant dense<0.000000e+00> : vector<4xf32>
    %70 = vector.multi_reduction <add>, %69, %cst_20 [0] : vector<4x4xf32> to vector<4xf32>
    %71 = vector.shape_cast %70 : vector<4xf32> to vector<1x4xf32>
    %72 = arith.addf %71, %2 : vector<1x4xf32>
    %73 = vector.shape_cast %64 : vector<1x4xf32> to vector<1x4xf32>
    %74 = vector.broadcast %73 : vector<1x4xf32> to vector<4x4xf32>
    %75 = arith.mulf %0, %74 : vector<4x4xf32>
    %cst_21 = arith.constant dense<0.000000e+00> : vector<4xf32>
    %76 = vector.multi_reduction <add>, %75, %cst_21 [1] : vector<4x4xf32> to vector<4xf32>
    %77 = vector.shape_cast %76 : vector<4xf32> to vector<4x1xf32>
    %78 = arith.addf %77, %3 : vector<4x1xf32>
    %79 = math.tanh %72 : vector<1x4xf32>
    %80 = math.tanh %78 : vector<4x1xf32>
    %c0_22 = arith.constant 0 : index
    %c20 = arith.constant 20 : index
    %81 = vector.load %arg4[%c0_22, %c20] : memref<1x32xf32, #tpu.memory_space<vmem>>, vector<1x4xf32>
    tpu.vector_store %arg4[%c0_22, %c20], %79 {strides = array<i32>} : memref<1x32xf32, #tpu.memory_space<vmem>>, vector<1x4xf32>,
    %82 = vector.shape_cast %80 : vector<4x1xf32> to vector<4x1xf32>
    %83 = vector.broadcast %82 : vector<4x1xf32> to vector<4x4xf32>
    %84 = arith.mulf %1, %83 : vector<4x4xf32>
    %cst_23 = arith.constant dense<0.000000e+00> : vector<4xf32>
    %85 = vector.multi_reduction <add>, %84, %cst_23 [0] : vector<4x4xf32> to vector<4xf32>
    %86 = vector.shape_cast %85 : vector<4xf32> to vector<1x4xf32>
    %87 = arith.addf %86, %2 : vector<1x4xf32>
    %88 = vector.shape_cast %79 : vector<1x4xf32> to vector<1x4xf32>
    %89 = vector.broadcast %88 : vector<1x4xf32> to vector<4x4xf32>
    %90 = arith.mulf %0, %89 : vector<4x4xf32>
    %cst_24 = arith.constant dense<0.000000e+00> : vector<4xf32>
    %91 = vector.multi_reduction <add>, %90, %cst_24 [1] : vector<4x4xf32> to vector<4xf32>
    %92 = vector.shape_cast %91 : vector<4xf32> to vector<4x1xf32>
    %93 = arith.addf %92, %3 : vector<4x1xf32>
    %94 = math.tanh %87 : vector<1x4xf32>
    %95 = math.tanh %93 : vector<4x1xf32>
    %c0_25 = arith.constant 0 : index
    %c24 = arith.constant 24 : index
    %96 = vector.load %arg4[%c0_25, %c24] : memref<1x32xf32, #tpu.memory_space<vmem>>, vector<1x4xf32>
    tpu.vector_store %arg4[%c0_25, %c24], %94 {strides = array<i32>} : memref<1x32xf32, #tpu.memory_space<vmem>>, vector<1x4xf32>,
    %97 = vector.shape_cast %95 : vector<4x1xf32> to vector<4x1xf32>
    %98 = vector.broadcast %97 : vector<4x1xf32> to vector<4x4xf32>
    %99 = arith.mulf %1, %98 : vector<4x4xf32>
    %cst_26 = arith.constant dense<0.000000e+00> : vector<4xf32>
    %100 = vector.multi_reduction <add>, %99, %cst_26 [0] : vector<4x4xf32> to vector<4xf32>
    %101 = vector.shape_cast %100 : vector<4xf32> to vector<1x4xf32>
    %102 = arith.addf %101, %2 : vector<1x4xf32>
    %103 = math.tanh %102 : vector<1x4xf32>
    %c0_27 = arith.constant 0 : index
    %c28 = arith.constant 28 : index
    %104 = vector.load %arg4[%c0_27, %c28] : memref<1x32xf32, #tpu.memory_space<vmem>>, vector<1x4xf32>
    tpu.vector_store %arg4[%c0_27, %c28], %103 {strides = array<i32>} : memref<1x32xf32, #tpu.memory_space<vmem>>, vector<1x4xf32>,
    return
  }
}

</mosaic_0001>

<llo_original>
// kernel: tpu_custom_call.1
$region0: #{tpu_custom_call.1}
  #allocation0 [shape = 'u32[]', space=smem, size = 0x4, offset = 0x4, fixed_abs, tag = 'smem constant byte address 0x4 - core index']
  #allocation1 [shape = 'u32[144,128]{1,0:T(1,128)}', space=vmem, size = 0x12000, scoped, tag = 'internal scratch']
  %s0 = inlined_call_operand.vmem [shape: f32[4,4], index: 0, kind: input, shape index: {}]
  %s1 = inlined_call_operand.hbm [shape: f32[4,4], index: 1, kind: input, shape index: {}]
  %s2 = inlined_call_operand.vmem [shape: f32[1,4], index: 2, kind: input, shape index: {}]
  %s3 = inlined_call_operand.vmem [shape: f32[4,1], index: 3, kind: input, shape index: {}]
  %s4 = inlined_call_operand.hbm [shape: f32[1,32], index: 4, kind: output, shape index: {}]
  %s5 = sld [smem:[#allocation0]]
  $region30: #{tpu_custom_call.1} parent=0
    _
  %s7 = ssub.s32 1, %s5
  %s8 = scalar_select 0, %s7, %s5
  $region1: #{tpu_custom_call.1} parent=0
    #allocation2 [shape = 'u8[2048]{0}', space=vmem, size = 0x800, scoped, tag = 'input window, operand 1, single buffered']
    #allocation3 [shape = 's32[1]{0}', space=sflag, size = 0x4, scoped, tag = 'scoped memory for tpu_custom_call.1']
    #allocation4 [shape = 's32[1]{0}', space=sflag, size = 0x4, scoped, tag = 'scoped memory for tpu_custom_call.1']
    #allocation5 [shape = 'u8[512]{0}', space=vmem, size = 0x400, scoped, tag = 'output window, operand 0, single buffered']
    %9 = vsyncpa [#allocation3], 0
    %10 = vsyncpa [#allocation4], 0
    // Predicated region
    $region2: #{tpu_custom_call.1} parent=1 // pred_check
      _
    $region3: #{tpu_custom_call.1} parent=1 // pred_check_branch
      %12 = sbr.rel (0) target = $region5
    $region4: #{tpu_custom_call.1} parent=1 // pred_region
      _
    $region5: #{tpu_custom_call.1} parent=1 // pred_fallthru
      _
    // Predicated region
    $region6: #{tpu_custom_call.1} parent=1 // pred_check
      _
    $region7: #{tpu_custom_call.1} parent=1 // pred_check_branch
      %14 = sbr.rel (0) target = $region9
    $region8: #{tpu_custom_call.1} parent=1 // pred_region
      %s16 = ssub.s32 64, 64
      %17 = vsyncadd [#allocation3], %s16
      %s19 = sshll.u32 [#allocation2], 4
      %s20 = int_to_ptr.vmem [resolvable:$true] %s19
      %22 = dma.hbm_to_vmem [thread:$0]  %s1, 64, %s20, [#allocation3]
    $region9: #{tpu_custom_call.1} parent=1 // pred_fallthru
      _
    // Predicated region
    $region10: #{tpu_custom_call.1} parent=1 // pred_check
      _
    $region11: #{tpu_custom_call.1} parent=1 // pred_check_branch
      %24 = sbr.rel (0) target = $region13
    $region12: #{tpu_custom_call.1} parent=1 // pred_region
      _
    $region13: #{tpu_custom_call.1} parent=1 // pred_fallthru
      _
    // Predicated region
    $region14: #{tpu_custom_call.1} parent=1 // pred_check
      _
    $region15: #{tpu_custom_call.1} parent=1 // pred_check_branch
      %26 = sbr.rel (0) target = $region17
    $region16: #{tpu_custom_call.1} parent=1 // pred_region
      _
    $region17: #{tpu_custom_call.1} parent=1 // pred_fallthru
      _
    // Predicated region
    $region18: #{tpu_custom_call.1} parent=1 // pred_check
      _
    $region19: #{tpu_custom_call.1} parent=1 // pred_check_branch
      %28 = sbr.rel (0) target = $region21
    $region20: #{tpu_custom_call.1} parent=1 // pred_region
      %29 = dma.done [#allocation3], 64
    $region21: #{tpu_custom_call.1} parent=1 // pred_fallthru
      _
    %v30 = vld [vmem:[%s0] sm:$0xf]
    %v31 = vld [vmem:[#allocation2] sm:$0xf]
    %v32 = vld [vmem:[%s2] sm:$0x1]
    %v33 = vld [vmem:[%s3] sm:$0xf]
    %v34 = vtanh.pop %v32
    %v35 = vtanh.pop %v33
    %vm36 = vcmask 24576
    %37 = vst.msk [vmem:[#allocation5] sm:$0x1] %vm36, %v34
    %39 = vset.pattern.permute.xlu0 0
    %40 = vperm.xlu0 %39, %v35
    %v41 = vpop.permute.xlu0 %40
    %v43 = vmul.f32 %v31, %v41
    %vm44 = vcmask 27648
    %v45 = vsel %vm44, %v43, 0.0
    %v46 = vrot.slane %v45, 4
    %v47 = vadd.f32 %v45, %v46
    %v48 = vrot.slane %v47, 2
    %v49 = vadd.f32 %v47, %v48
    %v50 = vrot.slane %v49, 1
    %v51 = vadd.f32 %v49, %v50
    %v52 = vadd.f32 %v51, %v32
    %v54 = vlaneseq
    %v55 = vshrl.u32 %v54, 7
    %v56 = vsub.s32 0, %v55
    %v57 = vrot.slane %v34, %v56
    %v59 = vmul.f32 %v30, %v57
    %v60 = vsel %vm44, %v59, 0.0
    %61 = vadd.xlane.f32.xlu0 %v60
    %v62 = vpop.xlane.xlu0 %61
    %v63 = vadd.f32 %v62, %v33
    %v64 = vtanh.pop %v52
    %v65 = vtanh.pop %v63
    %67 = vrot.lane.b32.xlu0 %v64, 4
    %v68 = vpop.permute.xlu0 %67
    %vm70 = vcmask 57376
    %71 = vst.msk [vmem:[#allocation5] sm:$0x1] %vm70, %v68
    %73 = vset.pattern.permute.xlu0 0
    %74 = vperm.xlu0 %73, %v65
    %v75 = vpop.permute.xlu0 %74
    %v77 = vmul.f32 %v31, %v75
    %v78 = vsel %vm44, %v77, 0.0
    %v79 = vrot.slane %v78, 4
    %v80 = vadd.f32 %v78, %v79
    %v81 = vrot.slane %v80, 2
    %v82 = vadd.f32 %v80, %v81
    %v83 = vrot.slane %v82, 1
    %v84 = vadd.f32 %v82, %v83
    %v85 = vadd.f32 %v84, %v32
    %v86 = vlaneseq
    %v87 = vshrl.u32 %v86, 7
    %v88 = vsub.s32 0, %v87
    %v89 = vrot.slane %v64, %v88
    %v90 = vmul.f32 %v30, %v89
    %v91 = vsel %vm44, %v90, 0.0
    %92 = vadd.xlane.f32.xlu0 %v91
    %v93 = vpop.xlane.xlu0 %92
    %v94 = vadd.f32 %v93, %v33
    %v95 = vtanh.pop %v85
    %v96 = vtanh.pop %v94
    %98 = vrot.lane.b32.xlu0 %v95, 8
    %v99 = vpop.permute.xlu0 %98
    %vm101 = vcmask 90176
    %102 = vst.msk [vmem:[#allocation5] sm:$0x1] %vm101, %v99
    %104 = vset.pattern.permute.xlu0 0
    %105 = vperm.xlu0 %104, %v96
    %v106 = vpop.permute.xlu0 %105
    %v108 = vmul.f32 %v31, %v106
    %v109 = vsel %vm44, %v108, 0.0
    %v110 = vrot.slane %v109, 4
    %v111 = vadd.f32 %v109, %v110
    %v112 = vrot.slane %v111, 2
    %v113 = vadd.f32 %v111, %v112
    %v114 = vrot.slane %v113, 1
    %v115 = vadd.f32 %v113, %v114
    %v116 = vadd.f32 %v115, %v32
    %v117 = vlaneseq
    %v118 = vshrl.u32 %v117, 7
    %v119 = vsub.s32 0, %v118
    %v120 = vrot.slane %v95, %v119
    %v121 = vmul.f32 %v30, %v120
    %v122 = vsel %vm44, %v121, 0.0
    %123 = vadd.xlane.f32.xlu0 %v122
    %v124 = vpop.xlane.xlu0 %123
    %v125 = vadd.f32 %v124, %v33
    %v126 = vtanh.pop %v116
    %v127 = vtanh.pop %v125
    %129 = vrot.lane.b32.xlu0 %v126, 12
    %v130 = vpop.permute.xlu0 %129
    %vm132 = vcmask 122976
    %133 = vst.msk [vmem:[#allocation5] sm:$0x1] %vm132, %v130
    %135 = vset.pattern.permute.xlu0 0
    %136 = vperm.xlu0 %135, %v127
    %v137 = vpop.permute.xlu0 %136
    %v139 = vmul.f32 %v31, %v137
    %v140 = vsel %vm44, %v139, 0.0
    %v141 = vrot.slane %v140, 4
    %v142 = vadd.f32 %v140, %v141
    %v143 = vrot.slane %v142, 2
    %v144 = vadd.f32 %v142, %v143
    %v145 = vrot.slane %v144, 1
    %v146 = vadd.f32 %v144, %v145
    %v147 = vadd.f32 %v146, %v32
    %v148 = vlaneseq
    %v149 = vshrl.u32 %v148, 7
    %v150 = vsub.s32 0, %v149
    %v151 = vrot.slane %v126, %v150
    %v152 = vmul.f32 %v30, %v151
    %v153 = vsel %vm44, %v152, 0.0
    %154 = vadd.xlane.f32.xlu0 %v153
    %v155 = vpop.xlane.xlu0 %154
    %v156 = vadd.f32 %v155, %v33
    %v157 = vtanh.pop %v147
    %v158 = vtanh.pop %v156
    %160 = vrot.lane.b32.xlu0 %v157, 16
    %v161 = vpop.permute.xlu0 %160
    %vm163 = vcmask 155776
    %164 = vst.msk [vmem:[#allocation5] sm:$0x1] %vm163, %v161
    %166 = vset.pattern.permute.xlu0 0
    %167 = vperm.xlu0 %166, %v158
    %v168 = vpop.permute.xlu0 %167
    %v170 = vmul.f32 %v31, %v168
    %v171 = vsel %vm44, %v170, 0.0
    %v172 = vrot.slane %v171, 4
    %v173 = vadd.f32 %v171, %v172
    %v174 = vrot.slane %v173, 2
    %v175 = vadd.f32 %v173, %v174
    %v176 = vrot.slane %v175, 1
    %v177 = vadd.f32 %v175, %v176
    %v178 = vadd.f32 %v177, %v32
    %v179 = vlaneseq
    %v180 = vshrl.u32 %v179, 7
    %v181 = vsub.s32 0, %v180
    %v182 = vrot.slane %v157, %v181
    %v183 = vmul.f32 %v30, %v182
    %v184 = vsel %vm44, %v183, 0.0
    %185 = vadd.xlane.f32.xlu0 %v184
    %v186 = vpop.xlane.xlu0 %185
    %v187 = vadd.f32 %v186, %v33
    %v188 = vtanh.pop %v178
    %v189 = vtanh.pop %v187
    %191 = vrot.lane.b32.xlu0 %v188, 20
    %v192 = vpop.permute.xlu0 %191
    %vm194 = vcmask 188576
    %195 = vst.msk [vmem:[#allocation5] sm:$0x1] %vm194, %v192
    %197 = vset.pattern.permute.xlu0 0
    %198 = vperm.xlu0 %197, %v189
    %v199 = vpop.permute.xlu0 %198
    %v201 = vmul.f32 %v31, %v199
    %v202 = vsel %vm44, %v201, 0.0
    %v203 = vrot.slane %v202, 4
    %v204 = vadd.f32 %v202, %v203
    %v205 = vrot.slane %v204, 2
    %v206 = vadd.f32 %v204, %v205
    %v207 = vrot.slane %v206, 1
    %v208 = vadd.f32 %v206, %v207
    %v209 = vadd.f32 %v208, %v32
    %v210 = vlaneseq
    %v211 = vshrl.u32 %v210, 7
    %v212 = vsub.s32 0, %v211
    %v213 = vrot.slane %v188, %v212
    %v214 = vmul.f32 %v30, %v213
    %v215 = vsel %vm44, %v214, 0.0
    %216 = vadd.xlane.f32.xlu0 %v215
    %v217 = vpop.xlane.xlu0 %216
    %v218 = vadd.f32 %v217, %v33
    %v219 = vtanh.pop %v209
    %v220 = vtanh.pop %v218
    %222 = vrot.lane.b32.xlu0 %v219, 24
    %v223 = vpop.permute.xlu0 %222
    %vm225 = vcmask 221376
    %226 = vst.msk [vmem:[#allocation5] sm:$0x1] %vm225, %v223
    %228 = vset.pattern.permute.xlu0 0
    %229 = vperm.xlu0 %228, %v220
    %v230 = vpop.permute.xlu0 %229
    %v232 = vmul.f32 %v31, %v230
    %v233 = vsel %vm44, %v232, 0.0
    %v234 = vrot.slane %v233, 4
    %v235 = vadd.f32 %v233, %v234
    %v236 = vrot.slane %v235, 2
    %v237 = vadd.f32 %v235, %v236
    %v238 = vrot.slane %v237, 1
    %v239 = vadd.f32 %v237, %v238
    %v240 = vadd.f32 %v239, %v32
    %v241 = vtanh.pop %v240
    %243 = vrot.lane.b32.xlu0 %v241, 28
    %v244 = vpop.permute.xlu0 %243
    %vm246 = vcmask 254176
    %247 = vst.msk [vmem:[#allocation5] sm:$0x1] %vm246, %v244
    // Predicated region
    $region22: #{tpu_custom_call.1} parent=1 // pred_check
      _
    $region23: #{tpu_custom_call.1} parent=1 // pred_check_branch
      %249 = sbr.rel (0) target = $region25
    $region24: #{tpu_custom_call.1} parent=1 // pred_region
      %s251 = ssub.s32 16, 16
      %252 = vsyncadd [#allocation4], %s251
      %s254 = sshll.u32 [#allocation5], 4
      %s255 = int_to_ptr.vmem [resolvable:$true] %s254
      %257 = dma.vmem_to_hbm [thread:$0]  %s255, 16, %s4, [#allocation4]
    $region25: #{tpu_custom_call.1} parent=1 // pred_fallthru
      _
    // Predicated region
    $region26: #{tpu_custom_call.1} parent=1 // pred_check
      _
    $region27: #{tpu_custom_call.1} parent=1 // pred_check_branch
      %259 = sbr.rel (0) target = $region29
    $region28: #{tpu_custom_call.1} parent=1 // pred_region
      %260 = dma.done [#allocation4], 16
    $region29: #{tpu_custom_call.1} parent=1 // pred_fallthru
      _
    %261 = vsyncpa [#allocation3], 1
    %262 = vsyncpa [#allocation4], 1

</llo_original>
